<compile_context>
chip_gen: v7x
topology: tpu7x:2x2x1
jax: 0.10.0
libtpu: 0.0.40
codegen_flags: <defaults>
</compile_context>

<pallas_src>
import jax
import jax.numpy as jnp
from jax.experimental import pallas as pl
from jax.experimental.pallas import tpu as pltpu

LANES = 128
SUBLANES = 8
MIB = 1024 * 1024


def _swish_kernel(beta_ref, x_ref, o_ref):
    # beta_ref: SMEM scalar (shape (1,), f32); x_ref/o_ref: VMEM (block_rows, 128)
    beta = beta_ref[0]
    xv = x_ref[...].astype(jnp.float32)                      # in-register upcast
    z = beta * xv
    sig = pl.reciprocal(1.0 + jnp.exp(-z), approx=False)     # exp on EUP; exact recip
    o_ref[...] = (xv * sig).astype(o_ref.dtype)              # downcast on store


def _round_up(v: int, m: int) -> int:
    return -(-v // m) * m


def _vmem_capacity_bytes() -> int:
    try:
        return int(pltpu.get_tpu_info().vmem_capacity_bytes)
    except Exception:
        return 64 * MIB  # conservative (v7x-sized) fallback


def _swish_slab(slab: jax.Array, beta_arr: jax.Array) -> jax.Array:
    rows = slab.shape[0]
    itemsize = slab.dtype.itemsize

    # Generation-aware tile target / scoped-VMEM limit.
    big_vmem = _vmem_capacity_bytes() >= 100 * MIB   # v5e/v6e: 128 MiB; v7x: 64 MiB
    tile_target = (6 if big_vmem else 4) * MIB
    vmem_limit = (48 if big_vmem else 32) * MIB

    # Largest tile (rows multiple of 8) under the target size …
    max_rows = max(SUBLANES, (tile_target // (LANES * itemsize)) // SUBLANES * SUBLANES)
    # … but never more than half the slab, so grid >= 2 and both v7x TCs get work.
    half_rows = _round_up(pl.cdiv(rows, 2), SUBLANES)
    if rows < SUBLANES:
        block_rows = rows                 # block == full array dim (legal, tiny case)
    else:
        block_rows = min(max_rows, half_rows)
    grid = (pl.cdiv(rows, block_rows),)   # Pallas masks the partial last block

    return pl.pallas_call(
        _swish_kernel,
        out_shape=jax.ShapeDtypeStruct(slab.shape, slab.dtype),
        grid_spec=pltpu.PrefetchScalarGridSpec(
            num_scalar_prefetch=0,
            grid=grid,
            in_specs=[
                pl.BlockSpec(memory_space=pltpu.SMEM),                # beta scalar
                pl.BlockSpec((block_rows, LANES), lambda i: (i, 0)),  # x tile
            ],
            out_specs=pl.BlockSpec((block_rows, LANES), lambda i: (i, 0)),
        ),
        compiler_params=pltpu.CompilerParams(
            dimension_semantics=("parallel",),   # shard grid over v7x's 2 TCs
            vmem_limit_bytes=vmem_limit,
        ),
    )(beta_arr, slab)


def swish(x: jax.Array, beta) -> jax.Array:
    """x * sigmoid(beta * x), matching nodeik Swish. Any shape / float dtype."""
    orig_shape = x.shape
    n = x.size
    if n == 0:
        return x
    beta_arr = jnp.asarray(beta, jnp.float32).reshape((1,))
    flat = x.reshape(-1)                                  # view, no copy
    rem = n % LANES

    if rem == 0:
        # Aligned (common) case: one kernel pass, zero extra HBM traffic.
        slab = flat.reshape(n // LANES, LANES)
        return _swish_slab(slab, beta_arr).reshape(orig_shape)

    # Ragged (rare) case: pad to a lane multiple, run the kernel, slice back.
    pad = LANES - rem
    slab = jnp.pad(flat, (0, pad)).reshape((n + pad) // LANES, LANES)
    out = _swish_slab(slab, beta_arr).reshape(-1)[:n]
    return out.reshape(orig_shape)


if __name__ == "__main__":
    key = jax.random.PRNGKey(0)
    beta = jnp.float32(1.0)  # nn.Parameter(torch.tensor(1.0)) init

    # NCHW input, consistent with typical conv usage in odefunc.py
    x = jax.random.normal(key, (2, 4, 16, 16), dtype=jnp.float32)
    y = jax.block_until_ready(swish(x, beta))
    ref = x * jax.nn.sigmoid(beta * x)
    assert y.shape == x.shape and y.dtype == x.dtype
    assert jnp.max(jnp.abs(y - ref)) < 1e-5

    # Ragged size (not a multiple of 128): exercises the pad/slice fallback.
    x2 = jax.random.normal(jax.random.PRNGKey(1), (5, 7, 9), dtype=jnp.float32)
    y2 = jax.block_until_ready(swish(x2, beta))
    ref2 = x2 * jax.nn.sigmoid(beta * x2)
    assert y2.shape == x2.shape and jnp.max(jnp.abs(y2 - ref2)) < 1e-5

    print("KERNEL_OK")
</pallas_src>

<mosaic_0001>
module attributes {stable_mosaic.version = 11 : i64} {
  func.func @_swish_kernel(%arg0: i32, %arg1: memref<1xf32, #tpu.memory_space<smem>>, %arg2: memref<8x128xf32, #tpu.memory_space<vmem>>, %arg3: memref<8x128xf32, #tpu.memory_space<vmem>>) attributes {dimension_semantics = [#tpu.dimension_semantics<parallel>], iteration_bounds = array<i64: 2>, scalar_prefetch = 0 : i64, scratch_operands = 0 : i64, tpu.core_type = #tpu.core_type<tc>, window_params = [{transform_indices = @transform_0, window_bounds = array<i64: 1>}, {transform_indices = @transform_1, window_bounds = array<i64: 8, 128>}, {transform_indices = @transform_2, window_bounds = array<i64: 8, 128>}]} {
    %c0 = arith.constant 0 : index
    %0 = memref.load %arg1[%c0] : memref<1xf32, #tpu.memory_space<smem>>
    %c0_0 = arith.constant 0 : index
    %c0_1 = arith.constant 0 : index
    %1 = vector.load %arg2[%c0_0, %c0_1] : memref<8x128xf32, #tpu.memory_space<vmem>>, vector<8x128xf32>
    %2 = vector.broadcast %0 : f32 to vector<8x128xf32>
    %3 = arith.mulf %2, %1 : vector<8x128xf32>
    %cst = arith.constant 0.000000e+00 : f32
    %4 = vector.broadcast %cst : f32 to vector<8x128xf32>
    %5 = arith.subf %4, %3 : vector<8x128xf32>
    %6 = math.exp %5 : vector<8x128xf32>
    %cst_2 = arith.constant 1.000000e+00 : f32
    %7 = vector.broadcast %cst_2 : f32 to vector<8x128xf32>
    %8 = arith.addf %7, %6 : vector<8x128xf32>
    %9 = tpu.reciprocal %8 : vector<8x128xf32> -> vector<8x128xf32>
    %10 = arith.mulf %1, %9 : vector<8x128xf32>
    %c0_3 = arith.constant 0 : index
    %c0_4 = arith.constant 0 : index
    %11 = vector.load %arg3[%c0_3, %c0_4] : memref<8x128xf32, #tpu.memory_space<vmem>>, vector<8x128xf32>
    tpu.vector_store %arg3[%c0_3, %c0_4], %10 {strides = array<i32>} : memref<8x128xf32, #tpu.memory_space<vmem>>, vector<8x128xf32>,
    return
  }
  func.func @transform_0(%arg0: i32) -> i32 {
    %c0_i32 = arith.constant 0 : i32
    %c0_i32_0 = arith.constant 0 : i32
    return %c0_i32 : i32
  }
  func.func @transform_1(%arg0: i32) -> (i32, i32) {
    %c0_i32 = arith.constant 0 : i32
    %c0_i32_0 = arith.constant 0 : i32
    return %arg0, %c0_i32 : i32, i32
  }
  func.func @transform_2(%arg0: i32) -> (i32, i32) {
    %c0_i32 = arith.constant 0 : i32
    %c0_i32_0 = arith.constant 0 : i32
    return %arg0, %c0_i32 : i32, i32
  }
}

</mosaic_0001>

<llo_original>
// kernel: tpu_custom_call.1
$region0: #{tpu_custom_call.1}
  #allocation0 [shape = 'u32[]', space=smem, size = 0x4, offset = 0x4, fixed_abs, tag = 'smem constant byte address 0x4 - core index']
  #allocation1 [shape = 'u32[144,128]{1,0:T(1,128)}', space=vmem, size = 0x12000, scoped, tag = 'internal scratch']
  #allocation2 [shape = 'f32[1]{0:T(128)S(6)}', space=smem, size = 0x200, scoped, tag = 'scoped memory for tpu_custom_call.1']
  %s0 = inlined_call_operand.<no memory space> [shape: f32[1], index: 0, kind: input, shape index: {}]
  %s1 = inlined_call_operand.hbm [shape: f32[16,128], index: 1, kind: input, shape index: {}]
  %s2 = inlined_call_operand.hbm [shape: f32[16,128], index: 2, kind: output, shape index: {}]
  %s3 = sld [smem:[#allocation0]]
  $region45: #{tpu_custom_call.1} parent=0
    _
  %s5 = ssub.s32 1, %s3
  %s6 = scalar_select 0, %s5, %s3
  %7 = sst [smem:[#allocation2]] %s0
  $region1: #{tpu_custom_call.1} parent=0
    #allocation3 [shape = 'u8[8192]{0}', space=vmem, size = 0x2000, scoped, tag = 'input window, operand 1']
    #allocation4 [shape = 's32[2]{0}', space=sflag, size = 0x8, scoped, tag = 'scoped memory for tpu_custom_call.1']
    #allocation5 [shape = 's32[2]{0}', space=sflag, size = 0x8, scoped, tag = 'scoped memory for tpu_custom_call.1']
    #allocation6 [shape = 'u8[8192]{0}', space=vmem, size = 0x2000, scoped, tag = 'output window, operand 0']
    %8 = vsyncpa [#allocation4], 0
    %s9 = scalar_lea.sflag [#allocation4], 1
    %10 = vsyncpa %s9, 0
    %11 = vsyncpa [#allocation5], 0
    %s12 = scalar_lea.sflag [#allocation5], 1
    %13 = vsyncpa %s12, 0
    loop: start=0, step=1, limit=4
    $region2: #{tpu_custom_call.1} parent=1 // loop_pre_header
      _
    $region3: #{tpu_custom_call.1} parent=1 // loop_header
      %s15 = sphi 0, %s19
      %p16 = scmp.ge.s32.totalorder %s15, 4
      %s23 = sphi 0, %s23
      %s25 = sphi 0, %s23
      %s26 = sphi 0, %s25
      %s40 = sphi 0, %s26
      %s46 = sphi 0, %s48
      %s49 = sphi 0, %s46
      %s50 = sphi 0, %s49
      %s66 = sphi 0, %s50
      %s72 = sphi 0, %s74
      %s75 = sphi 0, %s72
      %s76 = sphi 0, %s75
      %s92 = sphi 0, %s76
    $region4: #{tpu_custom_call.1} parent=1 // loop_header_branch
      %18 = sbr.rel (%p16) target = $region8
    $region5: #{tpu_custom_call.1} parent=1 // loop_body
      %s20 = ssub.s32 %s15, 1
      %s21 = ssub.s32 %s15, 2
      %s22 = sadd.s32 %s15, 1
      %s24 = sadd.s32 %s23, 1
      %p27 = scmp.eq.s32.totalorder %s15, 1
      %p28 = scmp.ne.s32.totalorder %s23, %s25
      %p29 = scmp.eq.s32.totalorder %s15, 0
      %p30 = por %p28, %p29
      %p31 = scmp.ne.s32.totalorder %s23, %s25
      %p32 = scmp.eq.s32.totalorder %s20, 1
      %p33 = por %p31, %p32
      %p34 = scmp.ne.s32.totalorder %s25, %s26
      %p35 = scmp.eq.s32.totalorder %s20, 0
      %p36 = por %p34, %p35
      %p37 = scmp.ne.s32.totalorder %s25, %s26
      %p38 = scmp.eq.s32.totalorder %s21, 1
      %p39 = por %p37, %p38
      %p41 = scmp.ne.s32.totalorder %s26, %s40
      %p42 = scmp.eq.s32.totalorder %s21, 0
      %p43 = por %p41, %p42
      %s44 = ssub.s32 %s15, %s22
      %p45 = scmp.eq.s32.totalorder %s44, 0
      %s47 = sadd.s32 %s46, 1
      %s48 = scalar_select %p45, %s46, %s47
      %p51 = pneg %p45
      %p52 = scmp.eq.s32.totalorder %s15, 1
      %p53 = por %p51, %p52
      %p54 = scmp.ne.s32.totalorder %s46, %s49
      %p55 = scmp.eq.s32.totalorder %s15, 0
      %p56 = por %p54, %p55
      %p57 = scmp.ne.s32.totalorder %s46, %s49
      %p58 = scmp.eq.s32.totalorder %s20, 1
      %p59 = por %p57, %p58
      %p60 = scmp.ne.s32.totalorder %s49, %s50
      %p61 = scmp.eq.s32.totalorder %s20, 0
      %p62 = por %p60, %p61
      %p63 = scmp.ne.s32.totalorder %s49, %s50
      %p64 = scmp.eq.s32.totalorder %s21, 1
      %p65 = por %p63, %p64
      %p67 = scmp.ne.s32.totalorder %s50, %s66
      %p68 = scmp.eq.s32.totalorder %s21, 0
      %p69 = por %p67, %p68
      %s70 = ssub.s32 %s15, %s22
      %p71 = scmp.eq.s32.totalorder %s70, 0
      %s73 = sadd.s32 %s72, 1
      %s74 = scalar_select %p71, %s72, %s73
      %p77 = pneg %p71
      %p78 = scmp.eq.s32.totalorder %s15, 1
      %p79 = por %p77, %p78
      %p80 = scmp.ne.s32.totalorder %s72, %s75
      %p81 = scmp.eq.s32.totalorder %s15, 0
      %p82 = por %p80, %p81
      %p83 = scmp.ne.s32.totalorder %s72, %s75
      %p84 = scmp.eq.s32.totalorder %s20, 1
      %p85 = por %p83, %p84
      %p86 = scmp.ne.s32.totalorder %s75, %s76
      %p87 = scmp.eq.s32.totalorder %s20, 0
      %p88 = por %p86, %p87
      %p89 = scmp.ne.s32.totalorder %s75, %s76
      %p90 = scmp.eq.s32.totalorder %s21, 1
      %p91 = por %p89, %p90
      %p93 = scmp.ne.s32.totalorder %s76, %s92
      %p94 = scmp.eq.s32.totalorder %s21, 0
      %p95 = por %p93, %p94
      %p96 = scmp.le.s32.totalorder 1, %s15
      %p97 = scmp.lt.s32.totalorder %s15, 3
      %p98 = pnand %p96, %p97
      %p99 = pneg %p98
      // Predicated region
      $region9: #{tpu_custom_call.1} parent=5 // pred_check
        _
      $region10: #{tpu_custom_call.1} parent=5 // pred_check_branch
        %101 = sbr.rel (%p98) target = $region12
      $region11: #{tpu_custom_call.1} parent=5 // pred_region
        %s102 = ssub.s32 %s15, 1
        // Predicated region
        $region13: #{tpu_custom_call.1} parent=11 // pred_check
          %p103 = pneg %p36
        $region14: #{tpu_custom_call.1} parent=11 // pred_check_branch
          %105 = sbr.rel (%p103) target = $region16
        $region15: #{tpu_custom_call.1} parent=11 // pred_region
          _
        $region16: #{tpu_custom_call.1} parent=11 // pred_fallthru
          _
      $region12: #{tpu_custom_call.1} parent=5 // pred_fallthru
        _
      %p106 = scmp.lt.s32.totalorder %s15, 2
      // Predicated region
      $region17: #{tpu_custom_call.1} parent=5 // pred_check
        %p107 = pneg %p106
      $region18: #{tpu_custom_call.1} parent=5 // pred_check_branch
        %109 = sbr.rel (%p107) target = $region20
      $region19: #{tpu_custom_call.1} parent=5 // pred_region
        // Predicated region
        $region21: #{tpu_custom_call.1} parent=19 // pred_check
          %p110 = pneg %p56
        $region22: #{tpu_custom_call.1} parent=19 // pred_check_branch
          %112 = sbr.rel (%p110) target = $region24
        $region23: #{tpu_custom_call.1} parent=19 // pred_region
          %s113 = sand.u32 %s46, 1
          %s114 = scalar_lea.sflag [#allocation4], %s113
          %s115 = sand.u32 %s46, 1
          %s116 = smul.addr %s115, 8
          %s117 = scalar_lea.vmem [#allocation3], %s116
          %s119 = ssub.s32 128, 128
          %120 = vsyncadd %s114, %s119
          %s121 = smul.addr %s15, 128
          %s122 = scalar_lea.hbm %s1, %s121
          %s124 = sshll.u32 %s117, 4
          %s125 = int_to_ptr.vmem [resolvable:$true] %s124
          %127 = dma.hbm_to_vmem [thread:$0]  %s122, 128, %s125, %s114
        $region24: #{tpu_custom_call.1} parent=19 // pred_fallthru
          _
      $region20: #{tpu_custom_call.1} parent=5 // pred_fallthru
        _
      %p128 = scmp.le.s32.totalorder 1, %s15
      %p129 = scmp.lt.s32.totalorder %s15, 3
      %p130 = pnand %p128, %p129
      %p131 = pneg %p130
      // Predicated region
      $region25: #{tpu_custom_call.1} parent=5 // pred_check
        _
      $region26: #{tpu_custom_call.1} parent=5 // pred_check_branch
        %133 = sbr.rel (%p130) target = $region28
      $region27: #{tpu_custom_call.1} parent=5 // pred_region
        %s134 = ssub.s32 %s15, 1
        %s135 = sand.u32 %s49, 1
        %s136 = scalar_lea.sflag [#allocation4], %s135
        %s137 = sand.u32 %s49, 1
        %s138 = smul.addr %s137, 8
        %s139 = scalar_lea.vmem [#allocation3], %s138
        // Predicated region
        $region29: #{tpu_custom_call.1} parent=27 // pred_check
          %p140 = pneg %p62
        $region30: #{tpu_custom_call.1} parent=27 // pred_check_branch
          %142 = sbr.rel (%p140) target = $region32
        $region31: #{tpu_custom_call.1} parent=27 // pred_region
          %143 = dma.done %s136, 128
        $region32: #{tpu_custom_call.1} parent=27 // pred_fallthru
          _
        %p144 = pneg %p36
        %p145 = pneg %p33
        %s146 = sand.u32 %s49, 1
        %s147 = scalar_lea.sflag [#allocation4], %s146
        %s148 = sand.u32 %s49, 1
        %s149 = smul.addr %s148, 8
        %s150 = scalar_lea.vmem [#allocation3], %s149
        %p151 = pneg %p62
        %p152 = pneg %p59
        %p153 = pneg %p88
        %p154 = pneg %p85
        %s155 = sand.u32 %s75, 1
        %s156 = scalar_lea.sflag [#allocation5], %s155
        %s157 = sand.u32 %s75, 1
        %s158 = smul.addr %s157, 8
        %s159 = scalar_lea.vmem [#allocation6], %s158
        %s160 = sld [smem:[#allocation2]]
        %v161 = vld [vmem:[%s139] sm:$0xff]
        %v162 = vstv %s160
        %v163 = vmul.f32 %v162, %v161
        %v164 = vsub.f32 0.0, %v163
        %v165 = vmul.f32 %v164, 1.442695
        %v166 = vpow.pop %v165
        %v167 = vadd.f32 %v166, 1.0
        %v168 = vrcp.pop %v167
        %v169 = vmul.f32 %v161, %v168
        %170 = vst [vmem:[%s159] sm:$0xff] %v169
        %s171 = sand.u32 %s75, 1
        %s172 = scalar_lea.sflag [#allocation5], %s171
        %s173 = sand.u32 %s75, 1
        %s174 = smul.addr %s173, 8
        %s175 = scalar_lea.vmem [#allocation6], %s174
        // Predicated region
        $region33: #{tpu_custom_call.1} parent=27 // pred_check
          %p176 = pneg %p85
        $region34: #{tpu_custom_call.1} parent=27 // pred_check_branch
          %178 = sbr.rel (%p176) target = $region36
        $region35: #{tpu_custom_call.1} parent=27 // pred_region
          %s180 = ssub.s32 128, 128
          %181 = vsyncadd %s172, %s180
          %s182 = smul.addr %s20, 128
          %s183 = scalar_lea.hbm %s2, %s182
          %s185 = sshll.u32 %s175, 4
          %s186 = int_to_ptr.vmem [resolvable:$true] %s185
          %188 = dma.vmem_to_hbm [thread:$0]  %s186, 128, %s183, %s172
        $region36: #{tpu_custom_call.1} parent=27 // pred_fallthru
          _
      $region28: #{tpu_custom_call.1} parent=5 // pred_fallthru
        _
      %p189 = scmp.le.s32.totalorder 2, %s15
      // Predicated region
      $region37: #{tpu_custom_call.1} parent=5 // pred_check
        %p190 = pneg %p189
      $region38: #{tpu_custom_call.1} parent=5 // pred_check_branch
        %192 = sbr.rel (%p190) target = $region40
      $region39: #{tpu_custom_call.1} parent=5 // pred_region
        %s193 = ssub.s32 %s15, 2
        // Predicated region
        $region41: #{tpu_custom_call.1} parent=39 // pred_check
          %p194 = pneg %p91
        $region42: #{tpu_custom_call.1} parent=39 // pred_check_branch
          %196 = sbr.rel (%p194) target = $region44
        $region43: #{tpu_custom_call.1} parent=39 // pred_region
          %s197 = sand.u32 %s76, 1
          %s198 = scalar_lea.sflag [#allocation5], %s197
          %s199 = sand.u32 %s76, 1
          %s200 = smul.addr %s199, 8
          %s201 = scalar_lea.vmem [#allocation6], %s200
          %202 = dma.done %s198, 128
        $region44: #{tpu_custom_call.1} parent=39 // pred_fallthru
          _
      $region40: #{tpu_custom_call.1} parent=5 // pred_fallthru
        _
    $region6: #{tpu_custom_call.1} parent=1 // loop_footer
      %s19 = sadd.s32 1, %s15
    $region7: #{tpu_custom_call.1} parent=1 // loop_footer_branch
      %14 = sbr.rel target = $region3
    $region8: #{tpu_custom_call.1} parent=1 // loop_exit
      _
    %203 = vsyncpa [#allocation4], 1
    %s204 = scalar_lea.sflag [#allocation4], 1
    %205 = vsyncpa %s204, 1
    %206 = vsyncpa [#allocation5], 1
    %s207 = scalar_lea.sflag [#allocation5], 1
    %208 = vsyncpa %s207, 1

</llo_original>
